<compile_context>
chip_gen: v7x
topology: tpu7x:2x2x1
jax: 0.10.0
libtpu: 0.0.40
codegen_flags: <defaults>
</compile_context>

<pallas_src>
import jax
import jax.numpy as jnp
from jax.experimental import pallas as pl
from jax.experimental.pallas import tpu as pltpu


def _awl_kernel(losses_ref, params_ref, loss_sum_ref, weights_ref):
    # losses_ref, params_ref: (1, num) f32 in VMEM (full-array blocks, no grid).
    # loss_sum_ref: (1, 1) f32 VMEM ; weights_ref: (1, num) f32 VMEM.
    p = params_ref[...]                          # (1, num)
    losses = losses_ref[...]                     # (1, num)
    p2 = p * p                                   # params[i] ** 2
    w = 0.5 * pl.reciprocal(p2, approx=False)    # exact 0.5 / params**2
    term = w * losses + jnp.log(1.0 + p2)        # per-task contribution
    loss_sum_ref[...] = jnp.sum(term, axis=-1, keepdims=True)  # (1, 1)
    weights_ref[...] = w


@jax.jit
def _automatic_weighted_loss_2d(losses_2d, params_2d):
    """losses_2d, params_2d: (1, num) f32 -> (scalar loss_sum, (num,) weights)."""
    num = losses_2d.shape[-1]
    loss_sum_2d, weights_2d = pl.pallas_call(
        _awl_kernel,
        out_shape=(
            jax.ShapeDtypeStruct((1, 1), jnp.float32),
            jax.ShapeDtypeStruct((1, num), jnp.float32),
        ),
        in_specs=[
            pl.BlockSpec(memory_space=pltpu.MemorySpace.VMEM),
            pl.BlockSpec(memory_space=pltpu.MemorySpace.VMEM),
        ],
        out_specs=(
            pl.BlockSpec(memory_space=pltpu.MemorySpace.VMEM),
            pl.BlockSpec(memory_space=pltpu.MemorySpace.VMEM),
        ),
    )(losses_2d, params_2d)
    return loss_sum_2d[0, 0], weights_2d[0]


def automatic_weighted_loss(losses, params):
    """losses: (num,) or (1,num); params: (num,) or (1,num)."""
    num = losses.shape[-1]
    losses_2d = jnp.asarray(losses, dtype=jnp.float32).reshape(1, num)
    params_2d = jnp.asarray(params, dtype=jnp.float32).reshape(1, num)
    return _automatic_weighted_loss_2d(losses_2d, params_2d)


class AutomaticWeightedLossPallas:
    """Mirror of the PyTorch module: params initialized to ones(num)."""

    def __init__(self, num=2):
        self.num = num
        # Stored already in the (1, num) f32 kernel layout: no per-call reshape HLO.
        self.params = jnp.ones((1, num), dtype=jnp.float32)

    def __call__(self, *x):
        # Fast path: a single pre-stacked (num,) / (1, num) loss vector.
        if len(x) == 1 and getattr(x[0], "ndim", 0) >= 1:
            losses_2d = jnp.asarray(x[0], dtype=jnp.float32).reshape(1, self.num)
        else:
            # Spec-compatible path: individual scalar losses (like the PyTorch forward).
            assert len(x) == self.num
            losses_2d = jnp.stack(
                [jnp.asarray(l, dtype=jnp.float32).reshape(()) for l in x]
            ).reshape(1, self.num)
        return _automatic_weighted_loss_2d(losses_2d, self.params)


if __name__ == "__main__":
    num = 2
    key = jax.random.PRNGKey(0)
    # Two synthetic scalar task losses (positive).
    raw = jax.random.uniform(key, (num,), dtype=jnp.float32, minval=0.5, maxval=2.0)

    awl = AutomaticWeightedLossPallas(num)

    # Spec-style call with individual scalar losses (matches PyTorch usage).
    loss_sum, weights = awl(raw[0], raw[1])
    # Optimized call with a pre-stacked loss vector (no Python-side stacking).
    loss_sum2, weights2 = awl(raw)

    loss_sum = jax.block_until_ready(loss_sum)
    weights = jax.block_until_ready(weights)
    loss_sum2 = jax.block_until_ready(loss_sum2)
    weights2 = jax.block_until_ready(weights2)

    # Reference check against plain JAX (same math as the PyTorch forward).
    p = awl.params.reshape(-1)
    ref_sum = jnp.sum(0.5 / p**2 * raw + jnp.log(1.0 + p**2))
    ref_w = 0.5 / p**2
    assert jnp.allclose(loss_sum, ref_sum, rtol=1e-5, atol=1e-5)
    assert jnp.allclose(weights, ref_w, rtol=1e-5, atol=1e-5)
    assert jnp.allclose(loss_sum2, ref_sum, rtol=1e-5, atol=1e-5)
    assert jnp.allclose(weights2, ref_w, rtol=1e-5, atol=1e-5)

    print("KERNEL_OK")
</pallas_src>

<mosaic_0001>
module attributes {stable_mosaic.version = 11 : i64} {
  func.func @_awl_kernel(%arg0: memref<1x2xf32, #tpu.memory_space<vmem>>, %arg1: memref<1x2xf32, #tpu.memory_space<vmem>>, %arg2: memref<1x1xf32, #tpu.memory_space<vmem>>, %arg3: memref<1x2xf32, #tpu.memory_space<vmem>>) attributes {dimension_semantics = [], scalar_prefetch = 0 : i64, scratch_operands = 0 : i64, tpu.core_type = #tpu.core_type<tc>} {
    %c0 = arith.constant 0 : index
    %c0_0 = arith.constant 0 : index
    %0 = vector.load %arg1[%c0, %c0_0] : memref<1x2xf32, #tpu.memory_space<vmem>>, vector<1x2xf32>
    %c0_1 = arith.constant 0 : index
    %c0_2 = arith.constant 0 : index
    %1 = vector.load %arg0[%c0_1, %c0_2] : memref<1x2xf32, #tpu.memory_space<vmem>>, vector<1x2xf32>
    %2 = arith.mulf %0, %0 : vector<1x2xf32>
    %3 = tpu.reciprocal %2 : vector<1x2xf32> -> vector<1x2xf32>
    %cst = arith.constant 5.000000e-01 : f32
    %4 = vector.broadcast %cst : f32 to vector<1x2xf32>
    %5 = arith.mulf %4, %3 : vector<1x2xf32>
    %6 = arith.mulf %5, %1 : vector<1x2xf32>
    %cst_3 = arith.constant 1.000000e+00 : f32
    %7 = vector.broadcast %cst_3 : f32 to vector<1x2xf32>
    %8 = arith.addf %7, %2 : vector<1x2xf32>
    %9 = math.log %8 : vector<1x2xf32>
    %10 = arith.addf %6, %9 : vector<1x2xf32>
    %cst_4 = arith.constant dense<0.000000e+00> : vector<1xf32>
    %11 = vector.multi_reduction <add>, %10, %cst_4 [1] : vector<1x2xf32> to vector<1xf32>
    %12 = vector.shape_cast %11 : vector<1xf32> to vector<1x1xf32>
    %c0_5 = arith.constant 0 : index
    %c0_6 = arith.constant 0 : index
    %13 = vector.load %arg2[%c0_5, %c0_6] : memref<1x1xf32, #tpu.memory_space<vmem>>, vector<1x1xf32>
    tpu.vector_store %arg2[%c0_5, %c0_6], %12 {strides = array<i32>} : memref<1x1xf32, #tpu.memory_space<vmem>>, vector<1x1xf32>,
    %c0_7 = arith.constant 0 : index
    %c0_8 = arith.constant 0 : index
    %14 = vector.load %arg3[%c0_7, %c0_8] : memref<1x2xf32, #tpu.memory_space<vmem>>, vector<1x2xf32>
    tpu.vector_store %arg3[%c0_7, %c0_8], %5 {strides = array<i32>} : memref<1x2xf32, #tpu.memory_space<vmem>>, vector<1x2xf32>,
    return
  }
}

</mosaic_0001>

<llo_original>
// kernel: _automatic_weighted_loss_2d.1
$region0: #{_automatic_weighted_loss_2d.1}
  #allocation0 [shape = 'u32[]', space=smem, size = 0x4, offset = 0x4, fixed_abs, tag = 'smem constant byte address 0x4 - core index']
  #allocation1 [shape = 'u32[144,128]{1,0:T(1,128)}', space=vmem, size = 0x12000, scoped, tag = 'internal scratch']
  %s0 = inlined_call_operand.hbm [shape: f32[1,2], index: 0, kind: input, shape index: {}]
  %s1 = inlined_call_operand.vmem [shape: f32[1,2], index: 1, kind: input, shape index: {}]
  %s2 = inlined_call_operand.hbm [shape: f32[1,1], index: 2, kind: output, shape index: {0}]
  %s3 = inlined_call_operand.hbm [shape: f32[1,2], index: 3, kind: output, shape index: {1}]
  %4 = xla_tuple %s2, %s3
  %s5 = sld [smem:[#allocation0]]
  $region30: #{_automatic_weighted_loss_2d.1} parent=0
    _
  %s7 = ssub.s32 1, %s5
  %s8 = scalar_select 0, %s7, %s5
  $region1: #{_automatic_weighted_loss_2d.1} parent=0
    #allocation2 [shape = 'u8[512]{0}', space=vmem, size = 0x400, scoped, tag = 'input window, operand 0, single buffered']
    #allocation3 [shape = 's32[1]{0}', space=sflag, size = 0x4, scoped, tag = 'scoped memory for _automatic_weighted_loss_2d.1']
    #allocation4 [shape = 's32[1]{0}', space=sflag, size = 0x4, scoped, tag = 'scoped memory for _automatic_weighted_loss_2d.1']
    #allocation5 [shape = 'u8[512]{0}', space=vmem, size = 0x400, scoped, tag = 'output window, operand 0, single buffered']
    #allocation6 [shape = 'u8[512]{0}', space=vmem, size = 0x400, scoped, tag = 'output window, operand 1, single buffered']
    #allocation7 [shape = 's32[1]{0}', space=sflag, size = 0x4, scoped, tag = 'scoped memory for _automatic_weighted_loss_2d.1']
    %9 = vsyncpa [#allocation3], 0
    %10 = vsyncpa [#allocation4], 0
    %11 = vsyncpa [#allocation7], 0
    // Predicated region
    $region2: #{_automatic_weighted_loss_2d.1} parent=1 // pred_check
      _
    $region3: #{_automatic_weighted_loss_2d.1} parent=1 // pred_check_branch
      %13 = sbr.rel (0) target = $region5
    $region4: #{_automatic_weighted_loss_2d.1} parent=1 // pred_region
      %s15 = ssub.s32 16, 16
      %16 = vsyncadd [#allocation3], %s15
      %s18 = sshll.u32 [#allocation2], 4
      %s19 = int_to_ptr.vmem [resolvable:$true] %s18
      %21 = dma.hbm_to_vmem [thread:$0]  %s0, 16, %s19, [#allocation3]
    $region5: #{_automatic_weighted_loss_2d.1} parent=1 // pred_fallthru
      _
    // Predicated region
    $region6: #{_automatic_weighted_loss_2d.1} parent=1 // pred_check
      _
    $region7: #{_automatic_weighted_loss_2d.1} parent=1 // pred_check_branch
      %23 = sbr.rel (0) target = $region9
    $region8: #{_automatic_weighted_loss_2d.1} parent=1 // pred_region
      _
    $region9: #{_automatic_weighted_loss_2d.1} parent=1 // pred_fallthru
      _
    // Predicated region
    $region10: #{_automatic_weighted_loss_2d.1} parent=1 // pred_check
      _
    $region11: #{_automatic_weighted_loss_2d.1} parent=1 // pred_check_branch
      %25 = sbr.rel (0) target = $region13
    $region12: #{_automatic_weighted_loss_2d.1} parent=1 // pred_region
      %26 = dma.done [#allocation3], 16
    $region13: #{_automatic_weighted_loss_2d.1} parent=1 // pred_fallthru
      _
    %v27 = vld [vmem:[%s1] sm:$0x1]
    %v28 = vld [vmem:[#allocation2] sm:$0x1]
    %v29 = vmul.f32 %v27, %v27
    %v30 = vrcp.pop %v29
    %v31 = vmul.f32 %v30, 0.5
    %v32 = vmul.f32 %v31, %v28
    %v33 = vadd.f32 %v29, 1.0
    %v34 = vlog2.pop %v33
    %v35 = vmul.f32 %v34, 0.6931472
    %v36 = vadd.f32 %v32, %v35
    %vm37 = vcmask 8192
    %v38 = vsel %vm37, %v36, 0.0
    %39 = vadd.xlane.f32.xlu0 %v38
    %v40 = vpop.xlane.xlu0 %39
    %vm41 = vcmask 0
    %42 = vst.msk [vmem:[#allocation5] sm:$0x1] %vm41, %v40
    %43 = vst.msk [vmem:[#allocation6] sm:$0x1] %vm37, %v31
    // Predicated region
    $region14: #{_automatic_weighted_loss_2d.1} parent=1 // pred_check
      _
    $region15: #{_automatic_weighted_loss_2d.1} parent=1 // pred_check_branch
      %45 = sbr.rel (0) target = $region17
    $region16: #{_automatic_weighted_loss_2d.1} parent=1 // pred_region
      %s47 = ssub.s32 16, 16
      %48 = vsyncadd [#allocation4], %s47
      %s50 = sshll.u32 [#allocation5], 4
      %s51 = int_to_ptr.vmem [resolvable:$true] %s50
      %53 = dma.vmem_to_hbm [thread:$0]  %s51, 16, %s2, [#allocation4]
    $region17: #{_automatic_weighted_loss_2d.1} parent=1 // pred_fallthru
      _
    // Predicated region
    $region18: #{_automatic_weighted_loss_2d.1} parent=1 // pred_check
      _
    $region19: #{_automatic_weighted_loss_2d.1} parent=1 // pred_check_branch
      %55 = sbr.rel (0) target = $region21
    $region20: #{_automatic_weighted_loss_2d.1} parent=1 // pred_region
      %s57 = ssub.s32 16, 16
      %58 = vsyncadd [#allocation7], %s57
      %s60 = sshll.u32 [#allocation6], 4
      %s61 = int_to_ptr.vmem [resolvable:$true] %s60
      %63 = dma.vmem_to_hbm [thread:$0]  %s61, 16, %s3, [#allocation7]
    $region21: #{_automatic_weighted_loss_2d.1} parent=1 // pred_fallthru
      _
    // Predicated region
    $region22: #{_automatic_weighted_loss_2d.1} parent=1 // pred_check
      _
    $region23: #{_automatic_weighted_loss_2d.1} parent=1 // pred_check_branch
      %65 = sbr.rel (0) target = $region25
    $region24: #{_automatic_weighted_loss_2d.1} parent=1 // pred_region
      %66 = dma.done [#allocation4], 16
    $region25: #{_automatic_weighted_loss_2d.1} parent=1 // pred_fallthru
      _
    // Predicated region
    $region26: #{_automatic_weighted_loss_2d.1} parent=1 // pred_check
      _
    $region27: #{_automatic_weighted_loss_2d.1} parent=1 // pred_check_branch
      %68 = sbr.rel (0) target = $region29
    $region28: #{_automatic_weighted_loss_2d.1} parent=1 // pred_region
      %69 = dma.done [#allocation7], 16
    $region29: #{_automatic_weighted_loss_2d.1} parent=1 // pred_fallthru
      _
    %70 = vsyncpa [#allocation3], 1
    %71 = vsyncpa [#allocation4], 1
    %72 = vsyncpa [#allocation7], 1

</llo_original>
